<compile_context>
chip_gen: v7x
topology: tpu7x:2x2x1
jax: 0.10.0
libtpu: 0.0.40
codegen_flags: <defaults>
</compile_context>

<pallas_src>
import jax
import jax.numpy as jnp
from jax import lax
from jax.experimental import pallas as pl
from jax.experimental.pallas import tpu as pltpu

_EPS = 1e-12  # same eps as torch.nn.functional.normalize
_VMEM_LIMIT = 48 * 1024 * 1024       # <= v7x physical 64 MiB; fine on v5e/v6e
_STAGE1_BUDGET = 24 * 1024 * 1024    # double-buffered stage-1 footprint target
_STAGE2_BUDGET = 28 * 1024 * 1024    # double-buffered stage-2 footprint target


def _round_up(x, m):
    return ((x + m - 1) // m) * m


def _centroid_kernel(z1_ref, z2_ref, c_ref):
    """c = (normalize(z1) + normalize(z2)) / 2 for one row-tile."""
    z1 = z1_ref[...].astype(jnp.float32)
    z2 = z2_ref[...].astype(jnp.float32)
    ss1 = jnp.sum(z1 * z1, axis=-1, keepdims=True)
    ss2 = jnp.sum(z2 * z2, axis=-1, keepdims=True)
    # rsqrt runs on the EUP slot; clamping sumsq keeps all-zero (padded) rows
    # at exactly zero.  The 0.5 centroid scale is folded into the inverse
    # norms, removing one full-tile VPU multiply.
    inv1 = 0.5 * lax.rsqrt(jnp.maximum(ss1, _EPS * _EPS))
    inv2 = 0.5 * lax.rsqrt(jnp.maximum(ss2, _EPS * _EPS))
    c_ref[...] = (z1 * inv1 + z2 * inv2).astype(c_ref.dtype)


def _gram_nt_kernel(i_tab_ref, j_tab_ref, a_ref, b_ref, g_ref):
    """G[i,j] += A_i @ A_j^T — contract the last (lane) dim of both tiles."""
    del i_tab_ref, j_tab_ref  # used only by the index_maps

    @pl.when(pl.program_id(1) == 0)
    def _():
        g_ref[...] = jnp.zeros_like(g_ref)

    g_ref[...] += lax.dot_general(
        a_ref[...], b_ref[...],
        dimension_numbers=(((1,), (1,)), ((), ())),
        preferred_element_type=jnp.float32)


def _gram_tn_kernel(i_tab_ref, j_tab_ref, a_ref, b_ref, g_ref):
    """G[i,j] += A_i^T @ A_j — contract the first (sublane) dim of both tiles."""
    del i_tab_ref, j_tab_ref  # used only by the index_maps

    @pl.when(pl.program_id(1) == 0)
    def _():
        g_ref[...] = jnp.zeros_like(g_ref)

    g_ref[...] += lax.dot_general(
        a_ref[...], b_ref[...],
        dimension_numbers=(((0,), (0,)), ((), ())),
        preferred_element_type=jnp.float32)


def mmcr_loss(z1, z2, *, mxu_dtype=jnp.bfloat16):
    """Pallas implementation of MMCR_Loss.forward (non-distributed)."""
    assert z1.shape == z2.shape and z1.ndim == 2
    N, D = z1.shape
    n_le_d = N <= D

    # Smaller Gram: m = min(N, D) output side, k = max(N, D) contraction side.
    m, k = (N, D) if n_le_d else (D, N)

    # Skip padding entirely when already 128-aligned (the common case); when
    # padding is needed anyway, round the Gram side to 256 so the MXU output
    # tiles fill v6e/v7x's 2x256 MXU.
    m_pad = m if m % 128 == 0 else _round_up(m, 256)
    k_pad = k if k % 128 == 0 else _round_up(k, 128)
    N_pad, D_pad = (m_pad, k_pad) if n_le_d else (k_pad, m_pad)

    if (N_pad, D_pad) != (N, D):
        z1p = jnp.pad(z1, ((0, N_pad - N), (0, D_pad - D)))
        z2p = jnp.pad(z2, ((0, N_pad - N), (0, D_pad - D)))
    else:
        z1p, z2p = z1, z2

    # ---- stage 1: row-normalized centroid (HBM-bound, big row tiles) ----
    tr = 8
    for t in (4096, 2048, 1024, 512, 256, 128, 64, 32, 16, 8):
        if N_pad % t == 0 and 32 * t * D_pad <= _STAGE1_BUDGET:
            tr = t
            break

    c = pl.pallas_call(
        _centroid_kernel,
        out_shape=jax.ShapeDtypeStruct((N_pad, D_pad), mxu_dtype),
        grid=(N_pad // tr,),
        in_specs=[pl.BlockSpec((tr, D_pad), lambda i: (i, 0)),
                  pl.BlockSpec((tr, D_pad), lambda i: (i, 0))],
        out_specs=pl.BlockSpec((tr, D_pad), lambda i: (i, 0)),
        compiler_params=pltpu.CompilerParams(
            dimension_semantics=("parallel",),
            vmem_limit_bytes=_VMEM_LIMIT),
    )(z1p, z2p)

    # ---- stage 2: triangular tiled Gram on the MXU, bf16 ops / f32 acc ----
    tm = tn = 128
    for t in (512, 384, 256, 128):
        if m_pad % t == 0:
            tm = tn = t
            break
    itemsize = jnp.dtype(mxu_dtype).itemsize
    tk = 128
    for t in (k_pad, 2048, 1024, 512, 384, 256, 128):
        if (t <= k_pad and k_pad % t == 0
                and 4 * tm * t * itemsize + 2 * tm * tn * 4 <= _STAGE2_BUDGET):
            tk = t
            break

    # Triangular (i <= j) tile-pair schedule via scalar-prefetch lookup tables:
    # halves MXU work, A re-reads and writeback when m_pad/tm > 1.
    T = m_pad // tm
    pairs = [(i, j) for i in range(T) for j in range(i, T)]
    i_tab = jnp.asarray([p[0] for p in pairs], dtype=jnp.int32)
    j_tab = jnp.asarray([p[1] for p in pairs], dtype=jnp.int32)

    if n_le_d:
        # G = c @ c^T : contract the lane dim of both (tm, tk) tiles.
        kernel = _gram_nt_kernel
        a_spec = pl.BlockSpec((tm, tk), lambda p, kk, it, jt: (it[p], kk))
        b_spec = pl.BlockSpec((tn, tk), lambda p, kk, it, jt: (jt[p], kk))
    else:
        # G = c^T @ c : contract the sublane dim of both (tk, tm) tiles —
        # no HBM-materialized transpose of c.
        kernel = _gram_tn_kernel
        a_spec = pl.BlockSpec((tk, tm), lambda p, kk, it, jt: (kk, it[p]))
        b_spec = pl.BlockSpec((tk, tn), lambda p, kk, it, jt: (kk, jt[p]))
    out_spec = pl.BlockSpec((tm, tn), lambda p, kk, it, jt: (it[p], jt[p]))

    gram = pl.pallas_call(
        kernel,
        out_shape=jax.ShapeDtypeStruct((m_pad, m_pad), jnp.float32),
        grid_spec=pltpu.PrefetchScalarGridSpec(
            num_scalar_prefetch=2,
            grid=(len(pairs), k_pad // tk),
            in_specs=[a_spec, b_spec],
            out_specs=out_spec),
        compiler_params=pltpu.CompilerParams(
            dimension_semantics=("arbitrary", "arbitrary"),
            vmem_limit_bytes=_VMEM_LIMIT),
    )(i_tab, j_tab, c, c)

    # Padded rows/cols of c are exactly zero, so the true Gram is the leading
    # (m, m) block.  Only i <= j tiles were computed: slice, then mirror the
    # computed upper triangle explicitly so the unwritten lower blocks are
    # never read (eigh may otherwise symmetrize against garbage).
    g = gram[:m, :m]
    g = jnp.triu(g) + jnp.triu(g, 1).T

    # Singular values of c = sqrt of eigenvalues of the Gram (clamp for safety).
    eigvals = jnp.linalg.eigvalsh(g)
    svals = jnp.sqrt(jnp.clip(eigvals, 0.0, None))
    return -1.0 * jnp.sum(svals)


def _reference_loss(z1, z2):
    z1n = z1 / jnp.maximum(jnp.linalg.norm(z1, axis=-1, keepdims=True), _EPS)
    z2n = z2 / jnp.maximum(jnp.linalg.norm(z2, axis=-1, keepdims=True), _EPS)
    c = (z1n + z2n) / 2.0
    return -1.0 * jnp.sum(jnp.linalg.svd(c, compute_uv=False))


if __name__ == "__main__":
    key = jax.random.PRNGKey(0)
    k1, k2, k3, k4 = jax.random.split(key, 4)

    # Case 1: N <= D (N x N Gram, lane-contraction path), default bf16 MXU ops.
    N, D = 8, 32
    z1 = jax.random.normal(k1, (N, D), dtype=jnp.float32)
    z2 = jax.random.normal(k2, (N, D), dtype=jnp.float32)
    ref = jax.block_until_ready(_reference_loss(z1, z2))
    loss = jax.block_until_ready(mmcr_loss(z1, z2))
    assert jnp.allclose(loss, ref, rtol=3e-2, atol=3e-2), (loss, ref)

    # Case 2: N > D (D x D Gram, sublane-contraction path — no XLA transpose).
    N2, D2 = 40, 16
    w1 = jax.random.normal(k3, (N2, D2), dtype=jnp.float32)
    w2 = jax.random.normal(k4, (N2, D2), dtype=jnp.float32)
    ref2 = jax.block_until_ready(_reference_loss(w1, w2))
    loss2 = jax.block_until_ready(mmcr_loss(w1, w2))
    assert jnp.allclose(loss2, ref2, rtol=3e-2, atol=3e-2), (loss2, ref2)

    # Case 3: opt-in f32 MXU operands — tight tolerance against the reference.
    loss_f32 = jax.block_until_ready(mmcr_loss(z1, z2, mxu_dtype=jnp.float32))
    assert jnp.allclose(loss_f32, ref, rtol=1e-4, atol=1e-4), (loss_f32, ref)
    loss2_f32 = jax.block_until_ready(mmcr_loss(w1, w2, mxu_dtype=jnp.float32))
    assert jnp.allclose(loss2_f32, ref2, rtol=1e-4, atol=1e-4), (loss2_f32, ref2)

    # Case 4: 128-aligned shapes (no pad round-trip) with a multi-tile
    # triangular Gram schedule (T=5 -> 15 tile pairs) to exercise the mirror.
    N3, D3 = 640, 1024
    k5, k6 = jax.random.split(k1, 2)
    v1 = jax.random.normal(k5, (N3, D3), dtype=jnp.float32)
    v2 = jax.random.normal(k6, (N3, D3), dtype=jnp.float32)
    ref3 = jax.block_until_ready(_reference_loss(v1, v2))
    loss3 = jax.block_until_ready(mmcr_loss(v1, v2))
    assert jnp.allclose(loss3, ref3, rtol=3e-2, atol=3e-2), (loss3, ref3)

    print("KERNEL_OK")
</pallas_src>

<mosaic_0001>
module attributes {stable_mosaic.version = 11 : i64} {
  func.func @_centroid_kernel(%arg0: i32, %arg1: memref<256x128xf32, #tpu.memory_space<vmem>>, %arg2: memref<256x128xf32, #tpu.memory_space<vmem>>, %arg3: memref<256x128xbf16, #tpu.memory_space<vmem>>) attributes {dimension_semantics = [#tpu.dimension_semantics<parallel>], iteration_bounds = array<i64: 1>, scalar_prefetch = 0 : i64, scratch_operands = 0 : i64, tpu.core_type = #tpu.core_type<tc>, window_params = [{transform_indices = @transform_0, window_bounds = array<i64: 256, 128>}, {transform_indices = @transform_1, window_bounds = array<i64: 256, 128>}, {transform_indices = @transform_2, window_bounds = array<i64: 256, 128>}]} {
    %c0 = arith.constant 0 : index
    %c0_0 = arith.constant 0 : index
    %0 = vector.load %arg1[%c0, %c0_0] : memref<256x128xf32, #tpu.memory_space<vmem>>, vector<256x128xf32>
    %c0_1 = arith.constant 0 : index
    %c0_2 = arith.constant 0 : index
    %1 = vector.load %arg2[%c0_1, %c0_2] : memref<256x128xf32, #tpu.memory_space<vmem>>, vector<256x128xf32>
    %2 = arith.mulf %0, %0 : vector<256x128xf32>
    %cst = arith.constant dense<0.000000e+00> : vector<256xf32>
    %3 = vector.multi_reduction <add>, %2, %cst [1] : vector<256x128xf32> to vector<256xf32>
    %4 = vector.shape_cast %3 : vector<256xf32> to vector<256x1xf32>
    %5 = arith.mulf %1, %1 : vector<256x128xf32>
    %cst_3 = arith.constant dense<0.000000e+00> : vector<256xf32>
    %6 = vector.multi_reduction <add>, %5, %cst_3 [1] : vector<256x128xf32> to vector<256xf32>
    %7 = vector.shape_cast %6 : vector<256xf32> to vector<256x1xf32>
    %cst_4 = arith.constant 1.000000e-24 : f32
    %8 = vector.broadcast %cst_4 : f32 to vector<256x1xf32>
    %9 = arith.maximumf %4, %8 : vector<256x1xf32>
    %10 = math.rsqrt %9 : vector<256x1xf32>
    %cst_5 = arith.constant 5.000000e-01 : f32
    %11 = vector.broadcast %cst_5 : f32 to vector<256x1xf32>
    %12 = arith.mulf %11, %10 : vector<256x1xf32>
    %cst_6 = arith.constant 1.000000e-24 : f32
    %13 = vector.broadcast %cst_6 : f32 to vector<256x1xf32>
    %14 = arith.maximumf %7, %13 : vector<256x1xf32>
    %15 = math.rsqrt %14 : vector<256x1xf32>
    %cst_7 = arith.constant 5.000000e-01 : f32
    %16 = vector.broadcast %cst_7 : f32 to vector<256x1xf32>
    %17 = arith.mulf %16, %15 : vector<256x1xf32>
    %18 = vector.broadcast %12 : vector<256x1xf32> to vector<256x128xf32>
    %19 = arith.mulf %0, %18 : vector<256x128xf32>
    %20 = vector.broadcast %17 : vector<256x1xf32> to vector<256x128xf32>
    %21 = arith.mulf %1, %20 : vector<256x128xf32>
    %22 = arith.addf %19, %21 : vector<256x128xf32>
    %23 = arith.truncf %22 : vector<256x128xf32> to vector<256x128xbf16>
    %c0_8 = arith.constant 0 : index
    %c0_9 = arith.constant 0 : index
    %24 = vector.load %arg3[%c0_8, %c0_9] : memref<256x128xbf16, #tpu.memory_space<vmem>>, vector<256x128xbf16>
    tpu.vector_store %arg3[%c0_8, %c0_9], %23 {strides = array<i32>} : memref<256x128xbf16, #tpu.memory_space<vmem>>, vector<256x128xbf16>,
    return
  }
  func.func @transform_0(%arg0: i32) -> (i32, i32) {
    %c0_i32 = arith.constant 0 : i32
    %c0_i32_0 = arith.constant 0 : i32
    return %arg0, %c0_i32 : i32, i32
  }
  func.func @transform_1(%arg0: i32) -> (i32, i32) {
    %c0_i32 = arith.constant 0 : i32
    %c0_i32_0 = arith.constant 0 : i32
    return %arg0, %c0_i32 : i32, i32
  }
  func.func @transform_2(%arg0: i32) -> (i32, i32) {
    %c0_i32 = arith.constant 0 : i32
    %c0_i32_0 = arith.constant 0 : i32
    return %arg0, %c0_i32 : i32, i32
  }
}

</mosaic_0001>

<llo_original>
// kernel: tpu_custom_call.1
$region0: #{tpu_custom_call.1}
  #allocation0 [shape = 'u32[]', space=smem, size = 0x4, offset = 0x4, fixed_abs, tag = 'smem constant byte address 0x4 - core index']
  #allocation1 [shape = 'u32[144,128]{1,0:T(1,128)}', space=vmem, size = 0x12000, scoped, tag = 'internal scratch']
  %s0 = inlined_call_operand.hbm [shape: f32[256,128], index: 0, kind: input, shape index: {}]
  %s1 = inlined_call_operand.hbm [shape: f32[256,128], index: 1, kind: input, shape index: {}]
  %s2 = inlined_call_operand.hbm [shape: bf16[256,128], index: 2, kind: output, shape index: {}]
  %s3 = sld [smem:[#allocation0]]
  $region26: #{tpu_custom_call.1} parent=0
    _
  %s5 = ssub.s32 1, %s3
  %s6 = scalar_select 0, %s5, %s3
  $region1: #{tpu_custom_call.1} parent=0
    #allocation2 [shape = 'u8[131072]{0}', space=vmem, size = 0x20000, scoped, tag = 'input window, operand 0, single buffered']
    #allocation3 [shape = 's32[1]{0}', space=sflag, size = 0x4, scoped, tag = 'scoped memory for tpu_custom_call.1']
    #allocation4 [shape = 's32[1]{0}', space=sflag, size = 0x4, scoped, tag = 'scoped memory for tpu_custom_call.1']
    #allocation5 [shape = 'u8[131072]{0}', space=vmem, size = 0x20000, scoped, tag = 'input window, operand 1, single buffered']
    #allocation6 [shape = 's32[1]{0}', space=sflag, size = 0x4, scoped, tag = 'scoped memory for tpu_custom_call.1']
    #allocation7 [shape = 'u8[65536]{0}', space=vmem, size = 0x10000, scoped, tag = 'output window, operand 0, single buffered']
    %7 = vsyncpa [#allocation3], 0
    %8 = vsyncpa [#allocation6], 0
    %9 = vsyncpa [#allocation4], 0
    // Predicated region
    $region2: #{tpu_custom_call.1} parent=1 // pred_check
      _
    $region3: #{tpu_custom_call.1} parent=1 // pred_check_branch
      %11 = sbr.rel (0) target = $region5
    $region4: #{tpu_custom_call.1} parent=1 // pred_region
      %s13 = ssub.s32 4096, 4096
      %14 = vsyncadd [#allocation3], %s13
      %s15 = sshll.u32 [#allocation2], 4
      %s16 = int_to_ptr.vmem [resolvable:$true] %s15
      %21 = dma.hbm_to_vmem [thread:$0]  %s0, 4096, %s16, [#allocation3], 128, 128, 8
    $region5: #{tpu_custom_call.1} parent=1 // pred_fallthru
      _
    // Predicated region
    $region6: #{tpu_custom_call.1} parent=1 // pred_check
      _
    $region7: #{tpu_custom_call.1} parent=1 // pred_check_branch
      %23 = sbr.rel (0) target = $region9
    $region8: #{tpu_custom_call.1} parent=1 // pred_region
      %s25 = ssub.s32 4096, 4096
      %26 = vsyncadd [#allocation6], %s25
      %s27 = sshll.u32 [#allocation5], 4
      %s28 = int_to_ptr.vmem [resolvable:$true] %s27
      %33 = dma.hbm_to_vmem [thread:$0]  %s1, 4096, %s28, [#allocation6], 128, 128, 8
    $region9: #{tpu_custom_call.1} parent=1 // pred_fallthru
      _
    // Predicated region
    $region10: #{tpu_custom_call.1} parent=1 // pred_check
      _
    $region11: #{tpu_custom_call.1} parent=1 // pred_check_branch
      %35 = sbr.rel (0) target = $region13
    $region12: #{tpu_custom_call.1} parent=1 // pred_region
      %36 = dma.done [#allocation3], 4096
    $region13: #{tpu_custom_call.1} parent=1 // pred_fallthru
      _
    // Predicated region
    $region14: #{tpu_custom_call.1} parent=1 // pred_check
      _
    $region15: #{tpu_custom_call.1} parent=1 // pred_check_branch
      %38 = sbr.rel (0) target = $region17
    $region16: #{tpu_custom_call.1} parent=1 // pred_region
      %39 = dma.done [#allocation6], 4096
    $region17: #{tpu_custom_call.1} parent=1 // pred_fallthru
      _
    %v40 = vld [vmem:[#allocation2] sm:$0xff]
    %v41 = vld [vmem:[#allocation2 + $0x8] sm:$0xff]
    %v42 = vld [vmem:[#allocation2 + $0x10] sm:$0xff]
    %v43 = vld [vmem:[#allocation2 + $0x18] sm:$0xff]
    %v44 = vld [vmem:[#allocation2 + $0x20] sm:$0xff]
    %v45 = vld [vmem:[#allocation2 + $0x28] sm:$0xff]
    %v46 = vld [vmem:[#allocation2 + $0x30] sm:$0xff]
    %v47 = vld [vmem:[#allocation2 + $0x38] sm:$0xff]
    %v48 = vld [vmem:[#allocation2 + $0x40] sm:$0xff]
    %v49 = vld [vmem:[#allocation2 + $0x48] sm:$0xff]
    %v50 = vld [vmem:[#allocation2 + $0x50] sm:$0xff]
    %v51 = vld [vmem:[#allocation2 + $0x58] sm:$0xff]
    %v52 = vld [vmem:[#allocation2 + $0x60] sm:$0xff]
    %v53 = vld [vmem:[#allocation2 + $0x68] sm:$0xff]
    %v54 = vld [vmem:[#allocation2 + $0x70] sm:$0xff]
    %v55 = vld [vmem:[#allocation2 + $0x78] sm:$0xff]
    %v56 = vld [vmem:[#allocation2 + $0x80] sm:$0xff]
    %v57 = vld [vmem:[#allocation2 + $0x88] sm:$0xff]
    %v58 = vld [vmem:[#allocation2 + $0x90] sm:$0xff]
    %v59 = vld [vmem:[#allocation2 + $0x98] sm:$0xff]
    %v60 = vld [vmem:[#allocation2 + $0xa0] sm:$0xff]
    %v61 = vld [vmem:[#allocation2 + $0xa8] sm:$0xff]
    %v62 = vld [vmem:[#allocation2 + $0xb0] sm:$0xff]
    %v63 = vld [vmem:[#allocation2 + $0xb8] sm:$0xff]
    %v64 = vld [vmem:[#allocation2 + $0xc0] sm:$0xff]
    %v65 = vld [vmem:[#allocation2 + $0xc8] sm:$0xff]
    %v66 = vld [vmem:[#allocation2 + $0xd0] sm:$0xff]
    %v67 = vld [vmem:[#allocation2 + $0xd8] sm:$0xff]
    %v68 = vld [vmem:[#allocation2 + $0xe0] sm:$0xff]
    %v69 = vld [vmem:[#allocation2 + $0xe8] sm:$0xff]
    %v70 = vld [vmem:[#allocation2 + $0xf0] sm:$0xff]
    %v71 = vld [vmem:[#allocation2 + $0xf8] sm:$0xff]
    %v72 = vld [vmem:[#allocation5] sm:$0xff]
    %v73 = vld [vmem:[#allocation5 + $0x8] sm:$0xff]
    %v74 = vld [vmem:[#allocation5 + $0x10] sm:$0xff]
    %v75 = vld [vmem:[#allocation5 + $0x18] sm:$0xff]
    %v76 = vld [vmem:[#allocation5 + $0x20] sm:$0xff]
    %v77 = vld [vmem:[#allocation5 + $0x28] sm:$0xff]
    %v78 = vld [vmem:[#allocation5 + $0x30] sm:$0xff]
    %v79 = vld [vmem:[#allocation5 + $0x38] sm:$0xff]
    %v80 = vld [vmem:[#allocation5 + $0x40] sm:$0xff]
    %v81 = vld [vmem:[#allocation5 + $0x48] sm:$0xff]
    %v82 = vld [vmem:[#allocation5 + $0x50] sm:$0xff]
    %v83 = vld [vmem:[#allocation5 + $0x58] sm:$0xff]
    %v84 = vld [vmem:[#allocation5 + $0x60] sm:$0xff]
    %v85 = vld [vmem:[#allocation5 + $0x68] sm:$0xff]
    %v86 = vld [vmem:[#allocation5 + $0x70] sm:$0xff]
    %v87 = vld [vmem:[#allocation5 + $0x78] sm:$0xff]
    %v88 = vld [vmem:[#allocation5 + $0x80] sm:$0xff]
    %v89 = vld [vmem:[#allocation5 + $0x88] sm:$0xff]
    %v90 = vld [vmem:[#allocation5 + $0x90] sm:$0xff]
    %v91 = vld [vmem:[#allocation5 + $0x98] sm:$0xff]
    %v92 = vld [vmem:[#allocation5 + $0xa0] sm:$0xff]
    %v93 = vld [vmem:[#allocation5 + $0xa8] sm:$0xff]
    %v94 = vld [vmem:[#allocation5 + $0xb0] sm:$0xff]
    %v95 = vld [vmem:[#allocation5 + $0xb8] sm:$0xff]
    %v96 = vld [vmem:[#allocation5 + $0xc0] sm:$0xff]
    %v97 = vld [vmem:[#allocation5 + $0xc8] sm:$0xff]
    %v98 = vld [vmem:[#allocation5 + $0xd0] sm:$0xff]
    %v99 = vld [vmem:[#allocation5 + $0xd8] sm:$0xff]
    %v100 = vld [vmem:[#allocation5 + $0xe0] sm:$0xff]
    %v101 = vld [vmem:[#allocation5 + $0xe8] sm:$0xff]
    %v102 = vld [vmem:[#allocation5 + $0xf0] sm:$0xff]
    %v103 = vld [vmem:[#allocation5 + $0xf8] sm:$0xff]
    %v104 = vmul.f32 %v40, %v40
    %v105 = vmul.f32 %v41, %v41
    %v106 = vmul.f32 %v42, %v42
    %v107 = vmul.f32 %v43, %v43
    %v108 = vmul.f32 %v44, %v44
    %v109 = vmul.f32 %v45, %v45
    %v110 = vmul.f32 %v46, %v46
    %v111 = vmul.f32 %v47, %v47
    %v112 = vmul.f32 %v48, %v48
    %v113 = vmul.f32 %v49, %v49
    %v114 = vmul.f32 %v50, %v50
    %v115 = vmul.f32 %v51, %v51
    %v116 = vmul.f32 %v52, %v52
    %v117 = vmul.f32 %v53, %v53
    %v118 = vmul.f32 %v54, %v54
    %v119 = vmul.f32 %v55, %v55
    %v120 = vmul.f32 %v56, %v56
    %v121 = vmul.f32 %v57, %v57
    %v122 = vmul.f32 %v58, %v58
    %v123 = vmul.f32 %v59, %v59
    %v124 = vmul.f32 %v60, %v60
    %v125 = vmul.f32 %v61, %v61
    %v126 = vmul.f32 %v62, %v62
    %v127 = vmul.f32 %v63, %v63
    %v128 = vmul.f32 %v64, %v64
    %v129 = vmul.f32 %v65, %v65
    %v130 = vmul.f32 %v66, %v66
    %v131 = vmul.f32 %v67, %v67
    %v132 = vmul.f32 %v68, %v68
    %v133 = vmul.f32 %v69, %v69
    %v134 = vmul.f32 %v70, %v70
    %v135 = vmul.f32 %v71, %v71
    %136 = vadd.xlane.f32.xlu0 %v104
    %v137 = vpop.xlane.xlu0 %136
    %138 = vadd.xlane.f32.xlu0 %v105
    %v139 = vpop.xlane.xlu0 %138
    %140 = vadd.xlane.f32.xlu0 %v106
    %v141 = vpop.xlane.xlu0 %140
    %142 = vadd.xlane.f32.xlu0 %v107
    %v143 = vpop.xlane.xlu0 %142
    %144 = vadd.xlane.f32.xlu0 %v108
    %v145 = vpop.xlane.xlu0 %144
    %146 = vadd.xlane.f32.xlu0 %v109
    %v147 = vpop.xlane.xlu0 %146
    %148 = vadd.xlane.f32.xlu0 %v110
    %v149 = vpop.xlane.xlu0 %148
    %150 = vadd.xlane.f32.xlu0 %v111
    %v151 = vpop.xlane.xlu0 %150
    %152 = vadd.xlane.f32.xlu0 %v112
    %v153 = vpop.xlane.xlu0 %152
    %154 = vadd.xlane.f32.xlu0 %v113
    %v155 = vpop.xlane.xlu0 %154
    %156 = vadd.xlane.f32.xlu0 %v114
    %v157 = vpop.xlane.xlu0 %156
    %158 = vadd.xlane.f32.xlu0 %v115
    %v159 = vpop.xlane.xlu0 %158
    %160 = vadd.xlane.f32.xlu0 %v116
    %v161 = vpop.xlane.xlu0 %160
    %162 = vadd.xlane.f32.xlu0 %v117
    %v163 = vpop.xlane.xlu0 %162
    %164 = vadd.xlane.f32.xlu0 %v118
    %v165 = vpop.xlane.xlu0 %164
    %166 = vadd.xlane.f32.xlu0 %v119
    %v167 = vpop.xlane.xlu0 %166
    %168 = vadd.xlane.f32.xlu0 %v120
    %v169 = vpop.xlane.xlu0 %168
    %170 = vadd.xlane.f32.xlu0 %v121
    %v171 = vpop.xlane.xlu0 %170
    %172 = vadd.xlane.f32.xlu0 %v122
    %v173 = vpop.xlane.xlu0 %172
    %174 = vadd.xlane.f32.xlu0 %v123
    %v175 = vpop.xlane.xlu0 %174
    %176 = vadd.xlane.f32.xlu0 %v124
    %v177 = vpop.xlane.xlu0 %176
    %178 = vadd.xlane.f32.xlu0 %v125
    %v179 = vpop.xlane.xlu0 %178
    %180 = vadd.xlane.f32.xlu0 %v126
    %v181 = vpop.xlane.xlu0 %180
    %182 = vadd.xlane.f32.xlu0 %v127
    %v183 = vpop.xlane.xlu0 %182
    %184 = vadd.xlane.f32.xlu0 %v128
    %v185 = vpop.xlane.xlu0 %184
    %186 = vadd.xlane.f32.xlu0 %v129
    %v187 = vpop.xlane.xlu0 %186
    %188 = vadd.xlane.f32.xlu0 %v130
    %v189 = vpop.xlane.xlu0 %188
    %190 = vadd.xlane.f32.xlu0 %v131
    %v191 = vpop.xlane.xlu0 %190
    %192 = vadd.xlane.f32.xlu0 %v132
    %v193 = vpop.xlane.xlu0 %192
    %194 = vadd.xlane.f32.xlu0 %v133
    %v195 = vpop.xlane.xlu0 %194
    %196 = vadd.xlane.f32.xlu0 %v134
    %v197 = vpop.xlane.xlu0 %196
    %198 = vadd.xlane.f32.xlu0 %v135
    %v199 = vpop.xlane.xlu0 %198
    %v200 = vmul.f32 %v72, %v72
    %v201 = vmul.f32 %v73, %v73
    %v202 = vmul.f32 %v74, %v74
    %v203 = vmul.f32 %v75, %v75
    %v204 = vmul.f32 %v76, %v76
    %v205 = vmul.f32 %v77, %v77
    %v206 = vmul.f32 %v78, %v78
    %v207 = vmul.f32 %v79, %v79
    %v208 = vmul.f32 %v80, %v80
    %v209 = vmul.f32 %v81, %v81
    %v210 = vmul.f32 %v82, %v82
    %v211 = vmul.f32 %v83, %v83
    %v212 = vmul.f32 %v84, %v84
    %v213 = vmul.f32 %v85, %v85
    %v214 = vmul.f32 %v86, %v86
    %v215 = vmul.f32 %v87, %v87
    %v216 = vmul.f32 %v88, %v88
    %v217 = vmul.f32 %v89, %v89
    %v218 = vmul.f32 %v90, %v90
    %v219 = vmul.f32 %v91, %v91
    %v220 = vmul.f32 %v92, %v92
    %v221 = vmul.f32 %v93, %v93
    %v222 = vmul.f32 %v94, %v94
    %v223 = vmul.f32 %v95, %v95
    %v224 = vmul.f32 %v96, %v96
    %v225 = vmul.f32 %v97, %v97
    %v226 = vmul.f32 %v98, %v98
    %v227 = vmul.f32 %v99, %v99
    %v228 = vmul.f32 %v100, %v100
    %v229 = vmul.f32 %v101, %v101
    %v230 = vmul.f32 %v102, %v102
    %v231 = vmul.f32 %v103, %v103
    %232 = vadd.xlane.f32.xlu0 %v200
    %v233 = vpop.xlane.xlu0 %232
    %234 = vadd.xlane.f32.xlu0 %v201
    %v235 = vpop.xlane.xlu0 %234
    %236 = vadd.xlane.f32.xlu0 %v202
    %v237 = vpop.xlane.xlu0 %236
    %238 = vadd.xlane.f32.xlu0 %v203
    %v239 = vpop.xlane.xlu0 %238
    %240 = vadd.xlane.f32.xlu0 %v204
    %v241 = vpop.xlane.xlu0 %240
    %242 = vadd.xlane.f32.xlu0 %v205
    %v243 = vpop.xlane.xlu0 %242
    %244 = vadd.xlane.f32.xlu0 %v206
    %v245 = vpop.xlane.xlu0 %244
    %246 = vadd.xlane.f32.xlu0 %v207
    %v247 = vpop.xlane.xlu0 %246
    %248 = vadd.xlane.f32.xlu0 %v208
    %v249 = vpop.xlane.xlu0 %248
    %250 = vadd.xlane.f32.xlu0 %v209
    %v251 = vpop.xlane.xlu0 %250
    %252 = vadd.xlane.f32.xlu0 %v210
    %v253 = vpop.xlane.xlu0 %252
    %254 = vadd.xlane.f32.xlu0 %v211
    %v255 = vpop.xlane.xlu0 %254
    %256 = vadd.xlane.f32.xlu0 %v212
    %v257 = vpop.xlane.xlu0 %256
    %258 = vadd.xlane.f32.xlu0 %v213
    %v259 = vpop.xlane.xlu0 %258
    %260 = vadd.xlane.f32.xlu0 %v214
    %v261 = vpop.xlane.xlu0 %260
    %262 = vadd.xlane.f32.xlu0 %v215
    %v263 = vpop.xlane.xlu0 %262
    %264 = vadd.xlane.f32.xlu0 %v216
    %v265 = vpop.xlane.xlu0 %264
    %266 = vadd.xlane.f32.xlu0 %v217
    %v267 = vpop.xlane.xlu0 %266
    %268 = vadd.xlane.f32.xlu0 %v218
    %v269 = vpop.xlane.xlu0 %268
    %270 = vadd.xlane.f32.xlu0 %v219
    %v271 = vpop.xlane.xlu0 %270
    %272 = vadd.xlane.f32.xlu0 %v220
    %v273 = vpop.xlane.xlu0 %272
    %274 = vadd.xlane.f32.xlu0 %v221
    %v275 = vpop.xlane.xlu0 %274
    %276 = vadd.xlane.f32.xlu0 %v222
    %v277 = vpop.xlane.xlu0 %276
    %278 = vadd.xlane.f32.xlu0 %v223
    %v279 = vpop.xlane.xlu0 %278
    %280 = vadd.xlane.f32.xlu0 %v224
    %v281 = vpop.xlane.xlu0 %280
    %282 = vadd.xlane.f32.xlu0 %v225
    %v283 = vpop.xlane.xlu0 %282
    %284 = vadd.xlane.f32.xlu0 %v226
    %v285 = vpop.xlane.xlu0 %284
    %286 = vadd.xlane.f32.xlu0 %v227
    %v287 = vpop.xlane.xlu0 %286
    %288 = vadd.xlane.f32.xlu0 %v228
    %v289 = vpop.xlane.xlu0 %288
    %290 = vadd.xlane.f32.xlu0 %v229
    %v291 = vpop.xlane.xlu0 %290
    %292 = vadd.xlane.f32.xlu0 %v230
    %v293 = vpop.xlane.xlu0 %292
    %294 = vadd.xlane.f32.xlu0 %v231
    %v295 = vpop.xlane.xlu0 %294
    %v296 = vmax.f32 %v137, 1e-24
    %v297 = vmax.f32 %v139, 1e-24
    %v298 = vmax.f32 %v141, 1e-24
    %v299 = vmax.f32 %v143, 1e-24
    %v300 = vmax.f32 %v145, 1e-24
    %v301 = vmax.f32 %v147, 1e-24
    %v302 = vmax.f32 %v149, 1e-24
    %v303 = vmax.f32 %v151, 1e-24
    %v304 = vmax.f32 %v153, 1e-24
    %v305 = vmax.f32 %v155, 1e-24
    %v306 = vmax.f32 %v157, 1e-24
    %v307 = vmax.f32 %v159, 1e-24
    %v308 = vmax.f32 %v161, 1e-24
    %v309 = vmax.f32 %v163, 1e-24
    %v310 = vmax.f32 %v165, 1e-24
    %v311 = vmax.f32 %v167, 1e-24
    %v312 = vmax.f32 %v169, 1e-24
    %v313 = vmax.f32 %v171, 1e-24
    %v314 = vmax.f32 %v173, 1e-24
    %v315 = vmax.f32 %v175, 1e-24
    %v316 = vmax.f32 %v177, 1e-24
    %v317 = vmax.f32 %v179, 1e-24
    %v318 = vmax.f32 %v181, 1e-24
    %v319 = vmax.f32 %v183, 1e-24
    %v320 = vmax.f32 %v185, 1e-24
    %v321 = vmax.f32 %v187, 1e-24
    %v322 = vmax.f32 %v189, 1e-24
    %v323 = vmax.f32 %v191, 1e-24
    %v324 = vmax.f32 %v193, 1e-24
    %v325 = vmax.f32 %v195, 1e-24
    %v326 = vmax.f32 %v197, 1e-24
    %v327 = vmax.f32 %v199, 1e-24
    %v328 = vrsqrt.pop %v296
    %v329 = vrsqrt.pop %v297
    %v330 = vrsqrt.pop %v298
    %v331 = vrsqrt.pop %v299
    %v332 = vrsqrt.pop %v300
    %v333 = vrsqrt.pop %v301
    %v334 = vrsqrt.pop %v302
    %v335 = vrsqrt.pop %v303
    %v336 = vrsqrt.pop %v304
    %v337 = vrsqrt.pop %v305
    %v338 = vrsqrt.pop %v306
    %v339 = vrsqrt.pop %v307
    %v340 = vrsqrt.pop %v308
    %v341 = vrsqrt.pop %v309
    %v342 = vrsqrt.pop %v310
    %v343 = vrsqrt.pop %v311
    %v344 = vrsqrt.pop %v312
    %v345 = vrsqrt.pop %v313
    %v346 = vrsqrt.pop %v314
    %v347 = vrsqrt.pop %v315
    %v348 = vrsqrt.pop %v316
    %v349 = vrsqrt.pop %v317
    %v350 = vrsqrt.pop %v318
    %v351 = vrsqrt.pop %v319
    %v352 = vrsqrt.pop %v320
    %v353 = vrsqrt.pop %v321
    %v354 = vrsqrt.pop %v322
    %v355 = vrsqrt.pop %v323
    %v356 = vrsqrt.pop %v324
    %v357 = vrsqrt.pop %v325
    %v358 = vrsqrt.pop %v326
    %v359 = vrsqrt.pop %v327
    %v360 = vmul.f32 %v328, 0.5
    %v361 = vmul.f32 %v329, 0.5
    %v362 = vmul.f32 %v330, 0.5
    %v363 = vmul.f32 %v331, 0.5
    %v364 = vmul.f32 %v332, 0.5
    %v365 = vmul.f32 %v333, 0.5
    %v366 = vmul.f32 %v334, 0.5
    %v367 = vmul.f32 %v335, 0.5
    %v368 = vmul.f32 %v336, 0.5
    %v369 = vmul.f32 %v337, 0.5
    %v370 = vmul.f32 %v338, 0.5
    %v371 = vmul.f32 %v339, 0.5
    %v372 = vmul.f32 %v340, 0.5
    %v373 = vmul.f32 %v341, 0.5
    %v374 = vmul.f32 %v342, 0.5
    %v375 = vmul.f32 %v343, 0.5
    %v376 = vmul.f32 %v344, 0.5
    %v377 = vmul.f32 %v345, 0.5
    %v378 = vmul.f32 %v346, 0.5
    %v379 = vmul.f32 %v347, 0.5
    %v380 = vmul.f32 %v348, 0.5
    %v381 = vmul.f32 %v349, 0.5
    %v382 = vmul.f32 %v350, 0.5
    %v383 = vmul.f32 %v351, 0.5
    %v384 = vmul.f32 %v352, 0.5
    %v385 = vmul.f32 %v353, 0.5
    %v386 = vmul.f32 %v354, 0.5
    %v387 = vmul.f32 %v355, 0.5
    %v388 = vmul.f32 %v356, 0.5
    %v389 = vmul.f32 %v357, 0.5
    %v390 = vmul.f32 %v358, 0.5
    %v391 = vmul.f32 %v359, 0.5
    %v392 = vmax.f32 %v233, 1e-24
    %v393 = vmax.f32 %v235, 1e-24
    %v394 = vmax.f32 %v237, 1e-24
    %v395 = vmax.f32 %v239, 1e-24
    %v396 = vmax.f32 %v241, 1e-24
    %v397 = vmax.f32 %v243, 1e-24
    %v398 = vmax.f32 %v245, 1e-24
    %v399 = vmax.f32 %v247, 1e-24
    %v400 = vmax.f32 %v249, 1e-24
    %v401 = vmax.f32 %v251, 1e-24
    %v402 = vmax.f32 %v253, 1e-24
    %v403 = vmax.f32 %v255, 1e-24
    %v404 = vmax.f32 %v257, 1e-24
    %v405 = vmax.f32 %v259, 1e-24
    %v406 = vmax.f32 %v261, 1e-24
    %v407 = vmax.f32 %v263, 1e-24
    %v408 = vmax.f32 %v265, 1e-24
    %v409 = vmax.f32 %v267, 1e-24
    %v410 = vmax.f32 %v269, 1e-24
    %v411 = vmax.f32 %v271, 1e-24
    %v412 = vmax.f32 %v273, 1e-24
    %v413 = vmax.f32 %v275, 1e-24
    %v414 = vmax.f32 %v277, 1e-24
    %v415 = vmax.f32 %v279, 1e-24
    %v416 = vmax.f32 %v281, 1e-24
    %v417 = vmax.f32 %v283, 1e-24
    %v418 = vmax.f32 %v285, 1e-24
    %v419 = vmax.f32 %v287, 1e-24
    %v420 = vmax.f32 %v289, 1e-24
    %v421 = vmax.f32 %v291, 1e-24
    %v422 = vmax.f32 %v293, 1e-24
    %v423 = vmax.f32 %v295, 1e-24
    %v424 = vrsqrt.pop %v392
    %v425 = vrsqrt.pop %v393
    %v426 = vrsqrt.pop %v394
    %v427 = vrsqrt.pop %v395
    %v428 = vrsqrt.pop %v396
    %v429 = vrsqrt.pop %v397
    %v430 = vrsqrt.pop %v398
    %v431 = vrsqrt.pop %v399
    %v432 = vrsqrt.pop %v400
    %v433 = vrsqrt.pop %v401
    %v434 = vrsqrt.pop %v402
    %v435 = vrsqrt.pop %v403
    %v436 = vrsqrt.pop %v404
    %v437 = vrsqrt.pop %v405
    %v438 = vrsqrt.pop %v406
    %v439 = vrsqrt.pop %v407
    %v440 = vrsqrt.pop %v408
    %v441 = vrsqrt.pop %v409
    %v442 = vrsqrt.pop %v410
    %v443 = vrsqrt.pop %v411
    %v444 = vrsqrt.pop %v412
    %v445 = vrsqrt.pop %v413
    %v446 = vrsqrt.pop %v414
    %v447 = vrsqrt.pop %v415
    %v448 = vrsqrt.pop %v416
    %v449 = vrsqrt.pop %v417
    %v450 = vrsqrt.pop %v418
    %v451 = vrsqrt.pop %v419
    %v452 = vrsqrt.pop %v420
    %v453 = vrsqrt.pop %v421
    %v454 = vrsqrt.pop %v422
    %v455 = vrsqrt.pop %v423
    %v456 = vmul.f32 %v424, 0.5
    %v457 = vmul.f32 %v425, 0.5
    %v458 = vmul.f32 %v426, 0.5
    %v459 = vmul.f32 %v427, 0.5
    %v460 = vmul.f32 %v428, 0.5
    %v461 = vmul.f32 %v429, 0.5
    %v462 = vmul.f32 %v430, 0.5
    %v463 = vmul.f32 %v431, 0.5
    %v464 = vmul.f32 %v432, 0.5
    %v465 = vmul.f32 %v433, 0.5
    %v466 = vmul.f32 %v434, 0.5
    %v467 = vmul.f32 %v435, 0.5
    %v468 = vmul.f32 %v436, 0.5
    %v469 = vmul.f32 %v437, 0.5
    %v470 = vmul.f32 %v438, 0.5
    %v471 = vmul.f32 %v439, 0.5
    %v472 = vmul.f32 %v440, 0.5
    %v473 = vmul.f32 %v441, 0.5
    %v474 = vmul.f32 %v442, 0.5
    %v475 = vmul.f32 %v443, 0.5
    %v476 = vmul.f32 %v444, 0.5
    %v477 = vmul.f32 %v445, 0.5
    %v478 = vmul.f32 %v446, 0.5
    %v479 = vmul.f32 %v447, 0.5
    %v480 = vmul.f32 %v448, 0.5
    %v481 = vmul.f32 %v449, 0.5
    %v482 = vmul.f32 %v450, 0.5
    %v483 = vmul.f32 %v451, 0.5
    %v484 = vmul.f32 %v452, 0.5
    %v485 = vmul.f32 %v453, 0.5
    %v486 = vmul.f32 %v454, 0.5
    %v487 = vmul.f32 %v455, 0.5
    %v488 = vmul.f32 %v40, %v360
    %v489 = vmul.f32 %v41, %v361
    %v490 = vmul.f32 %v42, %v362
    %v491 = vmul.f32 %v43, %v363
    %v492 = vmul.f32 %v44, %v364
    %v493 = vmul.f32 %v45, %v365
    %v494 = vmul.f32 %v46, %v366
    %v495 = vmul.f32 %v47, %v367
    %v496 = vmul.f32 %v48, %v368
    %v497 = vmul.f32 %v49, %v369
    %v498 = vmul.f32 %v50, %v370
    %v499 = vmul.f32 %v51, %v371
    %v500 = vmul.f32 %v52, %v372
    %v501 = vmul.f32 %v53, %v373
    %v502 = vmul.f32 %v54, %v374
    %v503 = vmul.f32 %v55, %v375
    %v504 = vmul.f32 %v56, %v376
    %v505 = vmul.f32 %v57, %v377
    %v506 = vmul.f32 %v58, %v378
    %v507 = vmul.f32 %v59, %v379
    %v508 = vmul.f32 %v60, %v380
    %v509 = vmul.f32 %v61, %v381
    %v510 = vmul.f32 %v62, %v382
    %v511 = vmul.f32 %v63, %v383
    %v512 = vmul.f32 %v64, %v384
    %v513 = vmul.f32 %v65, %v385
    %v514 = vmul.f32 %v66, %v386
    %v515 = vmul.f32 %v67, %v387
    %v516 = vmul.f32 %v68, %v388
    %v517 = vmul.f32 %v69, %v389
    %v518 = vmul.f32 %v70, %v390
    %v519 = vmul.f32 %v71, %v391
    %v520 = vmul.f32 %v72, %v456
    %v521 = vmul.f32 %v73, %v457
    %v522 = vmul.f32 %v74, %v458
    %v523 = vmul.f32 %v75, %v459
    %v524 = vmul.f32 %v76, %v460
    %v525 = vmul.f32 %v77, %v461
    %v526 = vmul.f32 %v78, %v462
    %v527 = vmul.f32 %v79, %v463
    %v528 = vmul.f32 %v80, %v464
    %v529 = vmul.f32 %v81, %v465
    %v530 = vmul.f32 %v82, %v466
    %v531 = vmul.f32 %v83, %v467
    %v532 = vmul.f32 %v84, %v468
    %v533 = vmul.f32 %v85, %v469
    %v534 = vmul.f32 %v86, %v470
    %v535 = vmul.f32 %v87, %v471
    %v536 = vmul.f32 %v88, %v472
    %v537 = vmul.f32 %v89, %v473
    %v538 = vmul.f32 %v90, %v474
    %v539 = vmul.f32 %v91, %v475
    %v540 = vmul.f32 %v92, %v476
    %v541 = vmul.f32 %v93, %v477
    %v542 = vmul.f32 %v94, %v478
    %v543 = vmul.f32 %v95, %v479
    %v544 = vmul.f32 %v96, %v480
    %v545 = vmul.f32 %v97, %v481
    %v546 = vmul.f32 %v98, %v482
    %v547 = vmul.f32 %v99, %v483
    %v548 = vmul.f32 %v100, %v484
    %v549 = vmul.f32 %v101, %v485
    %v550 = vmul.f32 %v102, %v486
    %v551 = vmul.f32 %v103, %v487
    %v552 = vadd.f32 %v488, %v520
    %v553 = vadd.f32 %v489, %v521
    %v554 = vadd.f32 %v490, %v522
    %v555 = vadd.f32 %v491, %v523
    %v556 = vadd.f32 %v492, %v524
    %v557 = vadd.f32 %v493, %v525
    %v558 = vadd.f32 %v494, %v526
    %v559 = vadd.f32 %v495, %v527
    %v560 = vadd.f32 %v496, %v528
    %v561 = vadd.f32 %v497, %v529
    %v562 = vadd.f32 %v498, %v530
    %v563 = vadd.f32 %v499, %v531
    %v564 = vadd.f32 %v500, %v532
    %v565 = vadd.f32 %v501, %v533
    %v566 = vadd.f32 %v502, %v534
    %v567 = vadd.f32 %v503, %v535
    %v568 = vadd.f32 %v504, %v536
    %v569 = vadd.f32 %v505, %v537
    %v570 = vadd.f32 %v506, %v538
    %v571 = vadd.f32 %v507, %v539
    %v572 = vadd.f32 %v508, %v540
    %v573 = vadd.f32 %v509, %v541
    %v574 = vadd.f32 %v510, %v542
    %v575 = vadd.f32 %v511, %v543
    %v576 = vadd.f32 %v512, %v544
    %v577 = vadd.f32 %v513, %v545
    %v578 = vadd.f32 %v514, %v546
    %v579 = vadd.f32 %v515, %v547
    %v580 = vadd.f32 %v516, %v548
    %v581 = vadd.f32 %v517, %v549
    %v582 = vadd.f32 %v518, %v550
    %v583 = vadd.f32 %v519, %v551
    %v584 = vpack.c.bf16 %v553, %v552
    %v585 = vpack.c.bf16 %v555, %v554
    %v586 = vpack.c.bf16 %v557, %v556
    %v587 = vpack.c.bf16 %v559, %v558
    %v588 = vpack.c.bf16 %v561, %v560
    %v589 = vpack.c.bf16 %v563, %v562
    %v590 = vpack.c.bf16 %v565, %v564
    %v591 = vpack.c.bf16 %v567, %v566
    %v592 = vpack.c.bf16 %v569, %v568
    %v593 = vpack.c.bf16 %v571, %v570
    %v594 = vpack.c.bf16 %v573, %v572
    %v595 = vpack.c.bf16 %v575, %v574
    %v596 = vpack.c.bf16 %v577, %v576
    %v597 = vpack.c.bf16 %v579, %v578
    %v598 = vpack.c.bf16 %v581, %v580
    %v599 = vpack.c.bf16 %v583, %v582
    %v616 = vunpack.c.l.b16 %v584
    %v617 = vunpack.c.h.b16 %v584
    %v618 = vunpack.c.l.b16 %v585
    %v619 = vunpack.c.h.b16 %v585
    %v620 = vunpack.c.l.b16 %v586
    %v621 = vunpack.c.h.b16 %v586
    %v622 = vunpack.c.l.b16 %v587
    %v623 = vunpack.c.h.b16 %v587
    %v624 = vunpack.c.l.b16 %v588
    %v625 = vunpack.c.h.b16 %v588
    %v626 = vunpack.c.l.b16 %v589
    %v627 = vunpack.c.h.b16 %v589
    %v628 = vunpack.c.l.b16 %v590
    %v629 = vunpack.c.h.b16 %v590
    %v630 = vunpack.c.l.b16 %v591
    %v631 = vunpack.c.h.b16 %v591
    %v632 = vunpack.c.l.b16 %v592
    %v633 = vunpack.c.h.b16 %v592
    %v634 = vunpack.c.l.b16 %v593
    %v635 = vunpack.c.h.b16 %v593
    %v636 = vunpack.c.l.b16 %v594
    %v637 = vunpack.c.h.b16 %v594
    %v638 = vunpack.c.l.b16 %v595
    %v639 = vunpack.c.h.b16 %v595
    %v640 = vunpack.c.l.b16 %v596
    %v641 = vunpack.c.h.b16 %v596
    %v642 = vunpack.c.l.b16 %v597
    %v643 = vunpack.c.h.b16 %v597
    %v644 = vunpack.c.l.b16 %v598
    %v645 = vunpack.c.h.b16 %v598
    %v646 = vunpack.c.l.b16 %v599
    %v647 = vunpack.c.h.b16 %v599
    %v648 = vpack.c.b16 %v616, %v616
    %v649 = vpack.c.b16 %v617, %v617
    %v650 = vpack.c.b16 %v618, %v618
    %v651 = vpack.c.b16 %v619, %v619
    %v652 = vpack.c.b16 %v620, %v620
    %v653 = vpack.c.b16 %v621, %v621
    %v654 = vpack.c.b16 %v622, %v622
    %v655 = vpack.c.b16 %v623, %v623
    %v656 = vpack.c.b16 %v624, %v624
    %v657 = vpack.c.b16 %v625, %v625
    %v658 = vpack.c.b16 %v626, %v626
    %v659 = vpack.c.b16 %v627, %v627
    %v660 = vpack.c.b16 %v628, %v628
    %v661 = vpack.c.b16 %v629, %v629
    %v662 = vpack.c.b16 %v630, %v630
    %v663 = vpack.c.b16 %v631, %v631
    %v664 = vpack.c.b16 %v632, %v632
    %v665 = vpack.c.b16 %v633, %v633
    %v666 = vpack.c.b16 %v634, %v634
    %v667 = vpack.c.b16 %v635, %v635
    %v668 = vpack.c.b16 %v636, %v636
    %v669 = vpack.c.b16 %v637, %v637
    %v670 = vpack.c.b16 %v638, %v638
    %v671 = vpack.c.b16 %v639, %v639
    %v672 = vpack.c.b16 %v640, %v640
    %v673 = vpack.c.b16 %v641, %v641
    %v674 = vpack.c.b16 %v642, %v642
    %v675 = vpack.c.b16 %v643, %v643
    %v676 = vpack.c.b16 %v644, %v644
    %v677 = vpack.c.b16 %v645, %v645
    %v678 = vpack.c.b16 %v646, %v646
    %v679 = vpack.c.b16 %v647, %v647
    %712 = vst [vmem:[#allocation7] sm:$0xf] %v648
    %713 = vst [vmem:[#allocation7 + $0x4] sm:$0xf] %v649
    %714 = vst [vmem:[#allocation7 + $0x8] sm:$0xf] %v650
    %715 = vst [vmem:[#allocation7 + $0xc] sm:$0xf] %v651
    %716 = vst [vmem:[#allocation7 + $0x10] sm:$0xf] %v652
    %717 = vst [vmem:[#allocation7 + $0x14] sm:$0xf] %v653
    %718 = vst [vmem:[#allocation7 + $0x18] sm:$0xf] %v654
    %719 = vst [vmem:[#allocation7 + $0x1c] sm:$0xf] %v655
    %720 = vst [vmem:[#allocation7 + $0x20] sm:$0xf] %v656
    %721 = vst [vmem:[#allocation7 + $0x24] sm:$0xf] %v657
    %722 = vst [vmem:[#allocation7 + $0x28] sm:$0xf] %v658
    %723 = vst [vmem:[#allocation7 + $0x2c] sm:$0xf] %v659
    %724 = vst [vmem:[#allocation7 + $0x30] sm:$0xf] %v660
    %725 = vst [vmem:[#allocation7 + $0x34] sm:$0xf] %v661
    %726 = vst [vmem:[#allocation7 + $0x38] sm:$0xf] %v662
    %727 = vst [vmem:[#allocation7 + $0x3c] sm:$0xf] %v663
    %728 = vst [vmem:[#allocation7 + $0x40] sm:$0xf] %v664
    %729 = vst [vmem:[#allocation7 + $0x44] sm:$0xf] %v665
    %730 = vst [vmem:[#allocation7 + $0x48] sm:$0xf] %v666
    %731 = vst [vmem:[#allocation7 + $0x4c] sm:$0xf] %v667
    %732 = vst [vmem:[#allocation7 + $0x50] sm:$0xf] %v668
    %733 = vst [vmem:[#allocation7 + $0x54] sm:$0xf] %v669
    %734 = vst [vmem:[#allocation7 + $0x58] sm:$0xf] %v670
    %735 = vst [vmem:[#allocation7 + $0x5c] sm:$0xf] %v671
    %736 = vst [vmem:[#allocation7 + $0x60] sm:$0xf] %v672
    %737 = vst [vmem:[#allocation7 + $0x64] sm:$0xf] %v673
    %738 = vst [vmem:[#allocation7 + $0x68] sm:$0xf] %v674
    %739 = vst [vmem:[#allocation7 + $0x6c] sm:$0xf] %v675
    %740 = vst [vmem:[#allocation7 + $0x70] sm:$0xf] %v676
    %741 = vst [vmem:[#allocation7 + $0x74] sm:$0xf] %v677
    %742 = vst [vmem:[#allocation7 + $0x78] sm:$0xf] %v678
    %743 = vst [vmem:[#allocation7 + $0x7c] sm:$0xf] %v679
    // Predicated region
    $region18: #{tpu_custom_call.1} parent=1 // pred_check
      _
    $region19: #{tpu_custom_call.1} parent=1 // pred_check_branch
      %745 = sbr.rel (0) target = $region21
    $region20: #{tpu_custom_call.1} parent=1 // pred_region
      %s747 = ssub.s32 2048, 2048
      %748 = vsyncadd [#allocation4], %s747
      %s749 = sshll.u32 [#allocation7], 4
      %s750 = int_to_ptr.vmem [resolvable:$true] %s749
      %755 = dma.vmem_to_hbm [thread:$0]  %s750, 2048, %s2, [#allocation4], 64, 64, 4
    $region21: #{tpu_custom_call.1} parent=1 // pred_fallthru
      _
    // Predicated region
    $region22: #{tpu_custom_call.1} parent=1 // pred_check
      _
    $region23: #{tpu_custom_call.1} parent=1 // pred_check_branch
      %757 = sbr.rel (0) target = $region25
    $region24: #{tpu_custom_call.1} parent=1 // pred_region
      %758 = dma.done [#allocation4], 2048
    $region25: #{tpu_custom_call.1} parent=1 // pred_fallthru
      _
    %759 = vsyncpa [#allocation3], 1
    %760 = vsyncpa [#allocation6], 1
    %761 = vsyncpa [#allocation4], 1

</llo_original>
